<compile_context>
chip_gen: v5e
topology: v5e:2x2
jax: 0.10.0
libtpu: 0.0.40
codegen_flags: <defaults>
</compile_context>

<pallas_src>
import math

import jax
import jax.numpy as jnp
from jax import lax
from jax.experimental import pallas as pl
from jax.experimental.pallas import tpu as pltpu


# TODO(synk): prior_association / association_discrepancy side-state uses
# torch.normal RNG + F.kl_div and never feeds the tensor returned by
# forward(); only the returned-tensor path is implemented here.


def _layer_norm(h, gamma, beta, eps=1e-5):
    # PyTorch nn.LayerNorm over the last dim (biased variance), f32 math.
    mu = jnp.mean(h, axis=-1, keepdims=True)
    var = jnp.mean((h - mu) ** 2, axis=-1, keepdims=True)
    return (h - mu) * lax.rsqrt(var + eps) * gamma + beta


def anomaly_stack_kernel(x_ref, wqkv_ref, g1_ref, b1_ref, wff_ref, bff_ref,
                         g2_ref, b2_ref, out_ref, h_ref):
    l = pl.program_id(0)

    # Load the input once; the activation stays resident in VMEM across layers.
    @pl.when(l == 0)
    def _():
        h_ref[...] = x_ref[...]

    h = h_ref[...]                                    # (B, n, D) f32
    B, n, D = h.shape
    h2d = h.reshape(B * n, D)                         # sublane-aligned collapse

    # --- AnomalyAttention.initialize: fused Q/K/V projection (bias=False) ---
    qkv = jnp.dot(h2d.astype(jnp.bfloat16), wqkv_ref[...],
                  preferred_element_type=jnp.float32)          # (B*n, 3D) f32
    Q = qkv[:, 0 * D:1 * D].reshape(B, n, D)
    K = qkv[:, 1 * D:2 * D].reshape(B, n, D)
    V = qkv[:, 2 * D:3 * D].reshape(B, n, D)

    # --- series_association: softmax(bmm(Q, K^T) / sqrt(d_model), dim=0) ---
    scale = 1.0 / math.sqrt(D)
    scores = jnp.einsum('bne,bme->bnm',
                        Q.astype(jnp.bfloat16), K.astype(jnp.bfloat16),
                        preferred_element_type=jnp.float32) * scale
    m = jnp.max(scores, axis=0, keepdims=True)        # softmax over BATCH axis
    e = jnp.exp(scores - m)
    S = e * pl.reciprocal(jnp.sum(e, axis=0, keepdims=True), approx=True)

    # --- reconstruction: Z = bmm(S, V) ---
    Z = jnp.einsum('bnm,bme->bne',
                   S.astype(jnp.bfloat16), V.astype(jnp.bfloat16),
                   preferred_element_type=jnp.float32)

    # --- block: residual + LN1 ---
    z1 = _layer_norm(Z + h, g1_ref[...], b1_ref[...])

    # --- feed-forward: Linear (bias=True) + ReLU ---
    ff = jnp.dot(z1.reshape(B * n, D).astype(jnp.bfloat16), wff_ref[...],
                 preferred_element_type=jnp.float32) + bff_ref[...]
    ff = jnp.maximum(ff, 0.0).reshape(B, n, D)

    # --- residual + LN2 ---
    out = _layer_norm(ff + z1, g2_ref[...], b2_ref[...])

    # Carry to the next layer; write HBM output only after the last layer.
    h_ref[...] = out

    @pl.when(l == pl.num_programs(0) - 1)
    def _():
        out_ref[...] = out


def anomaly_transformer_forward(x, params):
    """Runs the full transformer stack in one pallas_call."""
    B, n, D = x.shape
    L = params['wqkv'].shape[0]

    layer_idx = lambda l: (l, 0, 0)   # pick layer l's weight slab
    whole = lambda l: (0, 0, 0)       # x / out: same block every layer

    grid_spec = pltpu.PrefetchScalarGridSpec(
        num_scalar_prefetch=0,
        grid=(L,),
        in_specs=[
            pl.BlockSpec((B, n, D), whole),            # x (f32)
            pl.BlockSpec((None, D, 3 * D), layer_idx),  # fused Wqkv (bf16)
            pl.BlockSpec((None, 1, D), layer_idx),      # ln1 gamma
            pl.BlockSpec((None, 1, D), layer_idx),      # ln1 beta
            pl.BlockSpec((None, D, D), layer_idx),      # Wff (bf16)
            pl.BlockSpec((None, 1, D), layer_idx),      # bff
            pl.BlockSpec((None, 1, D), layer_idx),      # ln2 gamma
            pl.BlockSpec((None, 1, D), layer_idx),      # ln2 beta
        ],
        out_specs=pl.BlockSpec((B, n, D), whole),
        scratch_shapes=[pltpu.VMEM((B, n, D), jnp.float32)],   # resident act.
    )
    return pl.pallas_call(
        anomaly_stack_kernel,
        out_shape=jax.ShapeDtypeStruct((B, n, D), jnp.float32),
        grid_spec=grid_spec,
        compiler_params=pltpu.CompilerParams(
            dimension_semantics=("arbitrary",),        # layers are sequential
            vmem_limit_bytes=32 * 1024 * 1024),
    )(x, params['wqkv'], params['g1'], params['b1'],
      params['wff'], params['bff'], params['g2'], params['b2'])


def init_params(key, feat_dim, layers):
    """Deterministic synthetic parameters matching the torch module's shapes,
    stacked on a leading layer axis for the fused-layer kernel."""
    kq, kk, kv, kw, kb = jax.random.split(key, 5)
    scale = 1.0 / math.sqrt(feat_dim)
    u = lambda k, shape: jax.random.uniform(k, shape, jnp.float32, -scale, scale)

    wq = u(kq, (layers, feat_dim, feat_dim))
    wk = u(kk, (layers, feat_dim, feat_dim))
    wv = u(kv, (layers, feat_dim, feat_dim))
    return {
        # torch Linear weights are (out, in); stored here as (in, out).
        # Q/K/V fused into one (D, 3D) weight, pre-cast to bf16 for the MXU.
        'wqkv': jnp.concatenate([wq, wk, wv], axis=-1).astype(jnp.bfloat16),
        'wff': u(kw, (layers, feat_dim, feat_dim)).astype(jnp.bfloat16),
        'bff': u(kb, (layers, 1, feat_dim)),
        # LayerNorm default init: weight=1, bias=0 (kept f32).
        'g1': jnp.ones((layers, 1, feat_dim), jnp.float32),
        'b1': jnp.zeros((layers, 1, feat_dim), jnp.float32),
        'g2': jnp.ones((layers, 1, feat_dim), jnp.float32),
        'b2': jnp.zeros((layers, 1, feat_dim), jnp.float32),
    }


if __name__ == "__main__":
    batch = 2
    seqs = 8          # seq_dim
    in_channels = 32  # feat_dim
    layers = 2
    lambda_ = 0.1     # unused by forward

    key = jax.random.PRNGKey(0)
    key, kx = jax.random.split(key)
    x = jax.random.normal(kx, (batch, seqs, in_channels), jnp.float32)
    params = init_params(key, in_channels, layers)

    out = jax.block_until_ready(anomaly_transformer_forward(x, params))
    assert out.shape == (batch, seqs, in_channels)
    assert jnp.all(jnp.isfinite(out))
    print("KERNEL_OK")
</pallas_src>

<mosaic_0001>
module attributes {stable_mosaic.version = 11 : i64} {
  func.func @anomaly_stack_kernel(%arg0: i32, %arg1: memref<2x8x32xf32, #tpu.memory_space<vmem>>, %arg2: memref<1x32x96xbf16, #tpu.memory_space<vmem>>, %arg3: memref<1x1x32xf32, #tpu.memory_space<vmem>>, %arg4: memref<1x1x32xf32, #tpu.memory_space<vmem>>, %arg5: memref<1x32x32xbf16, #tpu.memory_space<vmem>>, %arg6: memref<1x1x32xf32, #tpu.memory_space<vmem>>, %arg7: memref<1x1x32xf32, #tpu.memory_space<vmem>>, %arg8: memref<1x1x32xf32, #tpu.memory_space<vmem>>, %arg9: memref<2x8x32xf32, #tpu.memory_space<vmem>>, %arg10: memref<2x8x32xf32, #tpu.memory_space<vmem>>) attributes {dimension_semantics = [#tpu.dimension_semantics<arbitrary>], iteration_bounds = array<i64: 2>, scalar_prefetch = 0 : i64, scratch_operands = 1 : i64, tpu.core_type = #tpu.core_type<tc>, window_params = [{pipeline_mode = #tpu.pipeline_mode<synchronous>, transform_indices = @transform_0, window_bounds = array<i64: 2, 8, 32>}, {transform_indices = @transform_1, window_bounds = array<i64: 1, 32, 96>}, {transform_indices = @transform_2, window_bounds = array<i64: 1, 1, 32>}, {transform_indices = @transform_3, window_bounds = array<i64: 1, 1, 32>}, {transform_indices = @transform_4, window_bounds = array<i64: 1, 32, 32>}, {transform_indices = @transform_5, window_bounds = array<i64: 1, 1, 32>}, {transform_indices = @transform_6, window_bounds = array<i64: 1, 1, 32>}, {transform_indices = @transform_7, window_bounds = array<i64: 1, 1, 32>}, {pipeline_mode = #tpu.pipeline_mode<synchronous>, transform_indices = @transform_8, window_bounds = array<i64: 2, 8, 32>}]} {
    %c0_i32 = arith.constant 0 : i32
    %0 = arith.cmpi eq, %arg0, %c0_i32 : i32
    %1 = arith.extui %0 : i1 to i32
    %c0_i32_0 = arith.constant 0 : i32
    %2 = arith.cmpi ne, %1, %c0_i32_0 : i32
    scf.if %2 {
      %c0_45 = arith.constant 0 : index
      %c0_46 = arith.constant 0 : index
      %c0_47 = arith.constant 0 : index
      %107 = vector.load %arg1[%c0_45, %c0_46, %c0_47] : memref<2x8x32xf32, #tpu.memory_space<vmem>>, vector<2x8x32xf32>
      %c0_48 = arith.constant 0 : index
      %c0_49 = arith.constant 0 : index
      %c0_50 = arith.constant 0 : index
      %108 = vector.load %arg10[%c0_48, %c0_49, %c0_50] : memref<2x8x32xf32, #tpu.memory_space<vmem>>, vector<2x8x32xf32>
      tpu.vector_store %arg10[%c0_48, %c0_49, %c0_50], %107 {strides = array<i32>} : memref<2x8x32xf32, #tpu.memory_space<vmem>>, vector<2x8x32xf32>,
    } else {
    }
    %c0 = arith.constant 0 : index
    %c0_1 = arith.constant 0 : index
    %c0_2 = arith.constant 0 : index
    %3 = vector.load %arg10[%c0, %c0_1, %c0_2] : memref<2x8x32xf32, #tpu.memory_space<vmem>>, vector<2x8x32xf32>
    %4 = vector.shape_cast %3 : vector<2x8x32xf32> to vector<16x32xf32>
    %5 = arith.truncf %4 : vector<16x32xf32> to vector<16x32xbf16>
    %c0_3 = arith.constant 0 : index
    %c0_4 = arith.constant 0 : index
    %c0_5 = arith.constant 0 : index
    %6 = vector.load %arg2[%c0_3, %c0_4, %c0_5] : memref<1x32x96xbf16, #tpu.memory_space<vmem>>, vector<1x32x96xbf16>
    %7 = vector.shape_cast %6 : vector<1x32x96xbf16> to vector<32x96xbf16>
    %cst = arith.constant dense<0.000000e+00> : vector<16x96xf32>
    %8 = tpu.matmul %5, %7, %cst {dimension_numbers = #tpu.dot_dimension_numbers<[1], [0], [0], [1], [0, 0, 1, 1], [], []>} : vector<16x32xbf16>, vector<32x96xbf16>, vector<16x96xf32> -> vector<16x96xf32>
    %9 = vector.extract_strided_slice %8 {offsets = [0, 0], sizes = [16, 32], strides = [1, 1]} : vector<16x96xf32> to vector<16x32xf32>
    %10 = vector.shape_cast %9 : vector<16x32xf32> to vector<2x8x32xf32>
    %11 = vector.extract_strided_slice %8 {offsets = [0, 32], sizes = [16, 32], strides = [1, 1]} : vector<16x96xf32> to vector<16x32xf32>
    %12 = vector.shape_cast %11 : vector<16x32xf32> to vector<2x8x32xf32>
    %13 = vector.extract_strided_slice %8 {offsets = [0, 64], sizes = [16, 32], strides = [1, 1]} : vector<16x96xf32> to vector<16x32xf32>
    %14 = vector.shape_cast %13 : vector<16x32xf32> to vector<2x8x32xf32>
    %15 = arith.truncf %10 : vector<2x8x32xf32> to vector<2x8x32xbf16>
    %16 = arith.truncf %12 : vector<2x8x32xf32> to vector<2x8x32xbf16>
    "tpu.trace_start"() <{level = 10 : i32, message = "bne,bme->bnm"}> : () -> ()
    %cst_6 = arith.constant dense<0.000000e+00> : vector<2x8x8xf32>
    %17 = tpu.matmul %15, %16, %cst_6 {dimension_numbers = #tpu.dot_dimension_numbers<[2], [2], [1], [1], [0, 0, 0, 1, 1, 1], [0], [0]>} : vector<2x8x32xbf16>, vector<2x8x32xbf16>, vector<2x8x8xf32> -> vector<2x8x8xf32>
    "tpu.trace_stop"() : () -> ()
    %cst_7 = arith.constant 0.176776692 : f32
    %18 = vector.broadcast %cst_7 : f32 to vector<2x8x8xf32>
    %19 = arith.mulf %17, %18 : vector<2x8x8xf32>
    %cst_8 = arith.constant dense<0xFF800000> : vector<8x8xf32>
    %20 = vector.multi_reduction <maximumf>, %19, %cst_8 [0] : vector<2x8x8xf32> to vector<8x8xf32>
    %21 = vector.shape_cast %20 : vector<8x8xf32> to vector<1x8x8xf32>
    %22 = vector.broadcast %21 : vector<1x8x8xf32> to vector<2x8x8xf32>
    %23 = arith.subf %19, %22 : vector<2x8x8xf32>
    %24 = math.exp %23 : vector<2x8x8xf32>
    %cst_9 = arith.constant dense<0.000000e+00> : vector<8x8xf32>
    %25 = vector.multi_reduction <add>, %24, %cst_9 [0] : vector<2x8x8xf32> to vector<8x8xf32>
    %26 = vector.shape_cast %25 : vector<8x8xf32> to vector<1x8x8xf32>
    %27 = tpu.reciprocal %26 {approx = true} : vector<1x8x8xf32> -> vector<1x8x8xf32>
    %28 = vector.broadcast %27 : vector<1x8x8xf32> to vector<2x8x8xf32>
    %29 = arith.mulf %24, %28 : vector<2x8x8xf32>
    %30 = arith.truncf %29 : vector<2x8x8xf32> to vector<2x8x8xbf16>
    %31 = arith.truncf %14 : vector<2x8x32xf32> to vector<2x8x32xbf16>
    "tpu.trace_start"() <{level = 10 : i32, message = "bnm,bme->bne"}> : () -> ()
    %cst_10 = arith.constant dense<0.000000e+00> : vector<2x8x32xf32>
    %32 = tpu.matmul %30, %31, %cst_10 {dimension_numbers = #tpu.dot_dimension_numbers<[2], [1], [1], [2], [0, 0, 0, 1, 1, 2], [0], [0]>} : vector<2x8x8xbf16>, vector<2x8x32xbf16>, vector<2x8x32xf32> -> vector<2x8x32xf32>
    "tpu.trace_stop"() : () -> ()
    %33 = arith.addf %32, %3 : vector<2x8x32xf32>
    %c0_11 = arith.constant 0 : index
    %c0_12 = arith.constant 0 : index
    %c0_13 = arith.constant 0 : index
    %34 = vector.load %arg3[%c0_11, %c0_12, %c0_13] : memref<1x1x32xf32, #tpu.memory_space<vmem>>, vector<1x1x32xf32>
    %35 = vector.shape_cast %34 : vector<1x1x32xf32> to vector<1x32xf32>
    %c0_14 = arith.constant 0 : index
    %c0_15 = arith.constant 0 : index
    %c0_16 = arith.constant 0 : index
    %36 = vector.load %arg4[%c0_14, %c0_15, %c0_16] : memref<1x1x32xf32, #tpu.memory_space<vmem>>, vector<1x1x32xf32>
    %37 = vector.shape_cast %36 : vector<1x1x32xf32> to vector<1x32xf32>
    %cst_17 = arith.constant dense<0.000000e+00> : vector<2x8xf32>
    %38 = vector.multi_reduction <add>, %33, %cst_17 [2] : vector<2x8x32xf32> to vector<2x8xf32>
    %39 = vector.shape_cast %38 : vector<2x8xf32> to vector<2x8x1xf32>
    %cst_18 = arith.constant 3.200000e+01 : f32
    %40 = vector.broadcast %cst_18 : f32 to vector<2x8x1xf32>
    %41 = arith.divf %39, %40 : vector<2x8x1xf32>
    %42 = vector.broadcast %41 : vector<2x8x1xf32> to vector<2x8x32xf32>
    %43 = arith.subf %33, %42 : vector<2x8x32xf32>
    %44 = arith.mulf %43, %43 : vector<2x8x32xf32>
    %cst_19 = arith.constant dense<0.000000e+00> : vector<2x8xf32>
    %45 = vector.multi_reduction <add>, %44, %cst_19 [2] : vector<2x8x32xf32> to vector<2x8xf32>
    %46 = vector.shape_cast %45 : vector<2x8xf32> to vector<2x8x1xf32>
    %cst_20 = arith.constant 3.200000e+01 : f32
    %47 = vector.broadcast %cst_20 : f32 to vector<2x8x1xf32>
    %48 = arith.divf %46, %47 : vector<2x8x1xf32>
    %49 = vector.broadcast %41 : vector<2x8x1xf32> to vector<2x8x32xf32>
    %50 = arith.subf %33, %49 : vector<2x8x32xf32>
    %cst_21 = arith.constant 9.99999974E-6 : f32
    %51 = vector.broadcast %cst_21 : f32 to vector<2x8x1xf32>
    %52 = arith.addf %48, %51 : vector<2x8x1xf32>
    %53 = math.rsqrt %52 : vector<2x8x1xf32>
    %54 = vector.broadcast %53 : vector<2x8x1xf32> to vector<2x8x32xf32>
    %55 = arith.mulf %50, %54 : vector<2x8x32xf32>
    %56 = vector.shape_cast %35 : vector<1x32xf32> to vector<1x1x32xf32>
    %57 = vector.broadcast %56 : vector<1x1x32xf32> to vector<2x8x32xf32>
    %58 = arith.mulf %55, %57 : vector<2x8x32xf32>
    %59 = vector.shape_cast %37 : vector<1x32xf32> to vector<1x1x32xf32>
    %60 = vector.broadcast %59 : vector<1x1x32xf32> to vector<2x8x32xf32>
    %61 = arith.addf %58, %60 : vector<2x8x32xf32>
    %62 = vector.shape_cast %61 : vector<2x8x32xf32> to vector<16x32xf32>
    %63 = arith.truncf %62 : vector<16x32xf32> to vector<16x32xbf16>
    %c0_22 = arith.constant 0 : index
    %c0_23 = arith.constant 0 : index
    %c0_24 = arith.constant 0 : index
    %64 = vector.load %arg5[%c0_22, %c0_23, %c0_24] : memref<1x32x32xbf16, #tpu.memory_space<vmem>>, vector<1x32x32xbf16>
    %65 = vector.shape_cast %64 : vector<1x32x32xbf16> to vector<32x32xbf16>
    %cst_25 = arith.constant dense<0.000000e+00> : vector<16x32xf32>
    %66 = tpu.matmul %63, %65, %cst_25 {dimension_numbers = #tpu.dot_dimension_numbers<[1], [0], [0], [1], [0, 0, 1, 1], [], []>} : vector<16x32xbf16>, vector<32x32xbf16>, vector<16x32xf32> -> vector<16x32xf32>
    %c0_26 = arith.constant 0 : index
    %c0_27 = arith.constant 0 : index
    %c0_28 = arith.constant 0 : index
    %67 = vector.load %arg6[%c0_26, %c0_27, %c0_28] : memref<1x1x32xf32, #tpu.memory_space<vmem>>, vector<1x1x32xf32>
    %68 = vector.shape_cast %67 : vector<1x1x32xf32> to vector<1x32xf32>
    %69 = vector.broadcast %68 : vector<1x32xf32> to vector<16x32xf32>
    %70 = arith.addf %66, %69 : vector<16x32xf32>
    %cst_29 = arith.constant 0.000000e+00 : f32
    %71 = vector.broadcast %cst_29 : f32 to vector<16x32xf32>
    %72 = arith.maximumf %70, %71 : vector<16x32xf32>
    %73 = vector.shape_cast %72 : vector<16x32xf32> to vector<2x8x32xf32>
    %74 = arith.addf %73, %61 : vector<2x8x32xf32>
    %c0_30 = arith.constant 0 : index
    %c0_31 = arith.constant 0 : index
    %c0_32 = arith.constant 0 : index
    %75 = vector.load %arg7[%c0_30, %c0_31, %c0_32] : memref<1x1x32xf32, #tpu.memory_space<vmem>>, vector<1x1x32xf32>
    %76 = vector.shape_cast %75 : vector<1x1x32xf32> to vector<1x32xf32>
    %c0_33 = arith.constant 0 : index
    %c0_34 = arith.constant 0 : index
    %c0_35 = arith.constant 0 : index
    %77 = vector.load %arg8[%c0_33, %c0_34, %c0_35] : memref<1x1x32xf32, #tpu.memory_space<vmem>>, vector<1x1x32xf32>
    %78 = vector.shape_cast %77 : vector<1x1x32xf32> to vector<1x32xf32>
    %cst_36 = arith.constant dense<0.000000e+00> : vector<2x8xf32>
    %79 = vector.multi_reduction <add>, %74, %cst_36 [2] : vector<2x8x32xf32> to vector<2x8xf32>
    %80 = vector.shape_cast %79 : vector<2x8xf32> to vector<2x8x1xf32>
    %cst_37 = arith.constant 3.200000e+01 : f32
    %81 = vector.broadcast %cst_37 : f32 to vector<2x8x1xf32>
    %82 = arith.divf %80, %81 : vector<2x8x1xf32>
    %83 = vector.broadcast %82 : vector<2x8x1xf32> to vector<2x8x32xf32>
    %84 = arith.subf %74, %83 : vector<2x8x32xf32>
    %85 = arith.mulf %84, %84 : vector<2x8x32xf32>
    %cst_38 = arith.constant dense<0.000000e+00> : vector<2x8xf32>
    %86 = vector.multi_reduction <add>, %85, %cst_38 [2] : vector<2x8x32xf32> to vector<2x8xf32>
    %87 = vector.shape_cast %86 : vector<2x8xf32> to vector<2x8x1xf32>
    %cst_39 = arith.constant 3.200000e+01 : f32
    %88 = vector.broadcast %cst_39 : f32 to vector<2x8x1xf32>
    %89 = arith.divf %87, %88 : vector<2x8x1xf32>
    %90 = vector.broadcast %82 : vector<2x8x1xf32> to vector<2x8x32xf32>
    %91 = arith.subf %74, %90 : vector<2x8x32xf32>
    %cst_40 = arith.constant 9.99999974E-6 : f32
    %92 = vector.broadcast %cst_40 : f32 to vector<2x8x1xf32>
    %93 = arith.addf %89, %92 : vector<2x8x1xf32>
    %94 = math.rsqrt %93 : vector<2x8x1xf32>
    %95 = vector.broadcast %94 : vector<2x8x1xf32> to vector<2x8x32xf32>
    %96 = arith.mulf %91, %95 : vector<2x8x32xf32>
    %97 = vector.shape_cast %76 : vector<1x32xf32> to vector<1x1x32xf32>
    %98 = vector.broadcast %97 : vector<1x1x32xf32> to vector<2x8x32xf32>
    %99 = arith.mulf %96, %98 : vector<2x8x32xf32>
    %100 = vector.shape_cast %78 : vector<1x32xf32> to vector<1x1x32xf32>
    %101 = vector.broadcast %100 : vector<1x1x32xf32> to vector<2x8x32xf32>
    %102 = arith.addf %99, %101 : vector<2x8x32xf32>
    %c0_41 = arith.constant 0 : index
    %c0_42 = arith.constant 0 : index
    %c0_43 = arith.constant 0 : index
    %103 = vector.load %arg10[%c0_41, %c0_42, %c0_43] : memref<2x8x32xf32, #tpu.memory_space<vmem>>, vector<2x8x32xf32>
    tpu.vector_store %arg10[%c0_41, %c0_42, %c0_43], %102 {strides = array<i32>} : memref<2x8x32xf32, #tpu.memory_space<vmem>>, vector<2x8x32xf32>,
    %c1_i32 = arith.constant 1 : i32
    %104 = arith.cmpi eq, %arg0, %c1_i32 : i32
    %105 = arith.extui %104 : i1 to i32
    %c0_i32_44 = arith.constant 0 : i32
    %106 = arith.cmpi ne, %105, %c0_i32_44 : i32
    scf.if %106 {
      %c0_45 = arith.constant 0 : index
      %c0_46 = arith.constant 0 : index
      %c0_47 = arith.constant 0 : index
      %107 = vector.load %arg9[%c0_45, %c0_46, %c0_47] : memref<2x8x32xf32, #tpu.memory_space<vmem>>, vector<2x8x32xf32>
      tpu.vector_store %arg9[%c0_45, %c0_46, %c0_47], %102 {strides = array<i32>} : memref<2x8x32xf32, #tpu.memory_space<vmem>>, vector<2x8x32xf32>,
    } else {
    }
    return
  }
  func.func @transform_0(%arg0: i32) -> (i32, i32, i32) {
    %c0_i32 = arith.constant 0 : i32
    %c0_i32_0 = arith.constant 0 : i32
    %c0_i32_1 = arith.constant 0 : i32
    %c0_i32_2 = arith.constant 0 : i32
    return %c0_i32, %c0_i32_0, %c0_i32_1 : i32, i32, i32
  }
  func.func @transform_1(%arg0: i32) -> (i32, i32, i32) {
    %c0_i32 = arith.constant 0 : i32
    %c0_i32_0 = arith.constant 0 : i32
    %c0_i32_1 = arith.constant 0 : i32
    return %arg0, %c0_i32, %c0_i32_0 : i32, i32, i32
  }
  func.func @transform_2(%arg0: i32) -> (i32, i32, i32) {
    %c0_i32 = arith.constant 0 : i32
    %c0_i32_0 = arith.constant 0 : i32
    %c0_i32_1 = arith.constant 0 : i32
    return %arg0, %c0_i32, %c0_i32_0 : i32, i32, i32
  }
  func.func @transform_3(%arg0: i32) -> (i32, i32, i32) {
    %c0_i32 = arith.constant 0 : i32
    %c0_i32_0 = arith.constant 0 : i32
    %c0_i32_1 = arith.constant 0 : i32
    return %arg0, %c0_i32, %c0_i32_0 : i32, i32, i32
  }
  func.func @transform_4(%arg0: i32) -> (i32, i32, i32) {
    %c0_i32 = arith.constant 0 : i32
    %c0_i32_0 = arith.constant 0 : i32
    %c0_i32_1 = arith.constant 0 : i32
    return %arg0, %c0_i32, %c0_i32_0 : i32, i32, i32
  }
  func.func @transform_5(%arg0: i32) -> (i32, i32, i32) {
    %c0_i32 = arith.constant 0 : i32
    %c0_i32_0 = arith.constant 0 : i32
    %c0_i32_1 = arith.constant 0 : i32
    return %arg0, %c0_i32, %c0_i32_0 : i32, i32, i32
  }
  func.func @transform_6(%arg0: i32) -> (i32, i32, i32) {
    %c0_i32 = arith.constant 0 : i32
    %c0_i32_0 = arith.constant 0 : i32
    %c0_i32_1 = arith.constant 0 : i32
    return %arg0, %c0_i32, %c0_i32_0 : i32, i32, i32
  }
  func.func @transform_7(%arg0: i32) -> (i32, i32, i32) {
    %c0_i32 = arith.constant 0 : i32
    %c0_i32_0 = arith.constant 0 : i32
    %c0_i32_1 = arith.constant 0 : i32
    return %arg0, %c0_i32, %c0_i32_0 : i32, i32, i32
  }
  func.func @transform_8(%arg0: i32) -> (i32, i32, i32) {
    %c0_i32 = arith.constant 0 : i32
    %c0_i32_0 = arith.constant 0 : i32
    %c0_i32_1 = arith.constant 0 : i32
    %c0_i32_2 = arith.constant 0 : i32
    return %c0_i32, %c0_i32_0, %c0_i32_1 : i32, i32, i32
  }
}

</mosaic_0001>

<llo_original>
// kernel: tpu_custom_call.1
$region0: #{tpu_custom_call.1}
  #allocation0 [shape = 'u32[]', space=smem, size = 0x4, offset = 0x4, fixed_abs, tag = 'smem constant byte address 0x4 - core index']
  #allocation1 [shape = 'u32[72,128]{1,0:T(1,128)}', space=vmem, size = 0x9000, scoped, tag = 'internal scratch']
  #allocation2 [shape = 'f32[2,8,32]{2,1,0:T(8,128)}', space=vmem, size = 0x2000, scoped, tag = 'scratch operand']
  %s0 = inlined_call_operand.hbm [shape: f32[2,8,32], index: 0, kind: input, shape index: {}]
  %s1 = inlined_call_operand.hbm [shape: bf16[2,32,96], index: 1, kind: input, shape index: {}]
  %s2 = inlined_call_operand.hbm [shape: f32[2,1,32], index: 2, kind: input, shape index: {}]
  %s3 = inlined_call_operand.vmem [shape: f32[2,1,32], index: 3, kind: input, shape index: {}]
  %s4 = inlined_call_operand.hbm [shape: bf16[2,32,32], index: 4, kind: input, shape index: {}]
  %s5 = inlined_call_operand.vmem [shape: f32[2,1,32], index: 5, kind: input, shape index: {}]
  %s6 = inlined_call_operand.hbm [shape: f32[2,1,32], index: 6, kind: input, shape index: {}]
  %s7 = inlined_call_operand.vmem [shape: f32[2,1,32], index: 7, kind: input, shape index: {}]
  %s8 = inlined_call_operand.hbm [shape: f32[2,8,32], index: 8, kind: output, shape index: {}]
  %s9 = sld [smem:[#allocation0]]
  $region93: #{tpu_custom_call.1} parent=0
    _
  %s11 = ssub.s32 1, %s9
  %s12 = scalar_select 0, %s11, %s9
  $region1: #{tpu_custom_call.1} parent=0
    #allocation3 [shape = 'u8[8192]{0}', space=vmem, size = 0x2000, scoped, tag = 'input window, operand 0, single buffered']
    #allocation4 [shape = 's32[2]{0}', space=sflag, size = 0x8, scoped, tag = 'scoped memory for tpu_custom_call.1']
    #allocation5 [shape = 's32[2]{0}', space=sflag, size = 0x8, scoped, tag = 'scoped memory for tpu_custom_call.1']
    #allocation6 [shape = 'u8[16384]{0}', space=vmem, size = 0x4000, scoped, tag = 'input window, operand 1']
    #allocation7 [shape = 's32[2]{0}', space=sflag, size = 0x8, scoped, tag = 'scoped memory for tpu_custom_call.1']
    #allocation8 [shape = 'u8[1024]{0}', space=vmem, size = 0x400, scoped, tag = 'input window, operand 2']
    #allocation9 [shape = 'u8[16384]{0}', space=vmem, size = 0x4000, scoped, tag = 'input window, operand 4']
    #allocation10 [shape = 's32[2]{0}', space=sflag, size = 0x8, scoped, tag = 'scoped memory for tpu_custom_call.1']
    #allocation11 [shape = 'u8[1024]{0}', space=vmem, size = 0x400, scoped, tag = 'input window, operand 6']
    #allocation12 [shape = 'u8[8192]{0}', space=vmem, size = 0x2000, scoped, tag = 'output window, operand 0, single buffered']
    %13 = vsyncpa [#allocation4], 0
    %14 = vsyncpa [#allocation7], 0
    %s15 = scalar_lea.sflag [#allocation7], 1
    %16 = vsyncpa %s15, 0
    %17 = vsyncpa [#allocation10], 0
    %s18 = scalar_lea.sflag [#allocation10], 1
    %19 = vsyncpa %s18, 0
    %20 = vsyncpa [#allocation5], 0
    loop: start=0, step=1, limit=4
    $region2: #{tpu_custom_call.1} parent=1 // loop_pre_header
      _
    $region3: #{tpu_custom_call.1} parent=1 // loop_header
      %s22 = sphi 0, %s26
      %p23 = scmp.ge.s32.totalorder %s22, 4
      %s30 = sphi 0, %s30
      %s32 = sphi 0, %s30
      %s33 = sphi 0, %s32
      %s47 = sphi 0, %s33
      %s53 = sphi 0, %s55
      %s56 = sphi 0, %s53
      %s57 = sphi 0, %s56
      %s73 = sphi 0, %s57
      %s79 = sphi 0, %s81
      %s82 = sphi 0, %s79
      %s83 = sphi 0, %s82
      %s99 = sphi 0, %s83
      %s105 = sphi 0, %s107
      %s108 = sphi 0, %s105
      %s109 = sphi 0, %s108
      %s125 = sphi 0, %s109
      %s131 = sphi 0, %s133
      %s134 = sphi 0, %s131
      %s135 = sphi 0, %s134
      %s151 = sphi 0, %s135
      %s157 = sphi 0, %s159
      %s160 = sphi 0, %s157
      %s161 = sphi 0, %s160
      %s177 = sphi 0, %s161
      %s183 = sphi 0, %s185
      %s186 = sphi 0, %s183
      %s187 = sphi 0, %s186
      %s203 = sphi 0, %s187
      %s209 = sphi 0, %s211
      %s212 = sphi 0, %s209
      %s213 = sphi 0, %s212
      %s229 = sphi 0, %s213
      %s233 = sphi 0, %s233
      %s235 = sphi 0, %s233
      %s236 = sphi 0, %s235
      %s250 = sphi 0, %s236
    $region4: #{tpu_custom_call.1} parent=1 // loop_header_branch
      %25 = sbr.rel (%p23) target = $region8
    $region5: #{tpu_custom_call.1} parent=1 // loop_body
      %s27 = ssub.s32 %s22, 1
      %s28 = ssub.s32 %s22, 2
      %s29 = sadd.s32 %s22, 1
      %s31 = sadd.s32 %s30, 1
      %p34 = scmp.eq.s32.totalorder %s22, 1
      %p35 = scmp.ne.s32.totalorder %s30, %s32
      %p36 = scmp.eq.s32.totalorder %s22, 0
      %p37 = por %p35, %p36
      %p38 = scmp.ne.s32.totalorder %s30, %s32
      %p39 = scmp.eq.s32.totalorder %s27, 1
      %p40 = por %p38, %p39
      %p41 = scmp.ne.s32.totalorder %s32, %s33
      %p42 = scmp.eq.s32.totalorder %s27, 0
      %p43 = por %p41, %p42
      %p44 = scmp.ne.s32.totalorder %s32, %s33
      %p45 = scmp.eq.s32.totalorder %s28, 1
      %p46 = por %p44, %p45
      %p48 = scmp.ne.s32.totalorder %s33, %s47
      %p49 = scmp.eq.s32.totalorder %s28, 0
      %p50 = por %p48, %p49
      %s51 = ssub.s32 %s22, %s29
      %p52 = scmp.eq.s32.totalorder %s51, 0
      %s54 = sadd.s32 %s53, 1
      %s55 = scalar_select %p52, %s53, %s54
      %p58 = pneg %p52
      %p59 = scmp.eq.s32.totalorder %s22, 1
      %p60 = por %p58, %p59
      %p61 = scmp.ne.s32.totalorder %s53, %s56
      %p62 = scmp.eq.s32.totalorder %s22, 0
      %p63 = por %p61, %p62
      %p64 = scmp.ne.s32.totalorder %s53, %s56
      %p65 = scmp.eq.s32.totalorder %s27, 1
      %p66 = por %p64, %p65
      %p67 = scmp.ne.s32.totalorder %s56, %s57
      %p68 = scmp.eq.s32.totalorder %s27, 0
      %p69 = por %p67, %p68
      %p70 = scmp.ne.s32.totalorder %s56, %s57
      %p71 = scmp.eq.s32.totalorder %s28, 1
      %p72 = por %p70, %p71
      %p74 = scmp.ne.s32.totalorder %s57, %s73
      %p75 = scmp.eq.s32.totalorder %s28, 0
      %p76 = por %p74, %p75
      %s77 = ssub.s32 %s22, %s29
      %p78 = scmp.eq.s32.totalorder %s77, 0
      %s80 = sadd.s32 %s79, 1
      %s81 = scalar_select %p78, %s79, %s80
      %p84 = pneg %p78
      %p85 = scmp.eq.s32.totalorder %s22, 1
      %p86 = por %p84, %p85
      %p87 = scmp.ne.s32.totalorder %s79, %s82
      %p88 = scmp.eq.s32.totalorder %s22, 0
      %p89 = por %p87, %p88
      %p90 = scmp.ne.s32.totalorder %s79, %s82
      %p91 = scmp.eq.s32.totalorder %s27, 1
      %p92 = por %p90, %p91
      %p93 = scmp.ne.s32.totalorder %s82, %s83
      %p94 = scmp.eq.s32.totalorder %s27, 0
      %p95 = por %p93, %p94
      %p96 = scmp.ne.s32.totalorder %s82, %s83
      %p97 = scmp.eq.s32.totalorder %s28, 1
      %p98 = por %p96, %p97
      %p100 = scmp.ne.s32.totalorder %s83, %s99
      %p101 = scmp.eq.s32.totalorder %s28, 0
      %p102 = por %p100, %p101
      %s103 = ssub.s32 %s22, %s29
      %p104 = scmp.eq.s32.totalorder %s103, 0
      %s106 = sadd.s32 %s105, 1
      %s107 = scalar_select %p104, %s105, %s106
      %p110 = pneg %p104
      %p111 = scmp.eq.s32.totalorder %s22, 1
      %p112 = por %p110, %p111
      %p113 = scmp.ne.s32.totalorder %s105, %s108
      %p114 = scmp.eq.s32.totalorder %s22, 0
      %p115 = por %p113, %p114
      %p116 = scmp.ne.s32.totalorder %s105, %s108
      %p117 = scmp.eq.s32.totalorder %s27, 1
      %p118 = por %p116, %p117
      %p119 = scmp.ne.s32.totalorder %s108, %s109
      %p120 = scmp.eq.s32.totalorder %s27, 0
      %p121 = por %p119, %p120
      %p122 = scmp.ne.s32.totalorder %s108, %s109
      %p123 = scmp.eq.s32.totalorder %s28, 1
      %p124 = por %p122, %p123
      %p126 = scmp.ne.s32.totalorder %s109, %s125
      %p127 = scmp.eq.s32.totalorder %s28, 0
      %p128 = por %p126, %p127
      %s129 = ssub.s32 %s22, %s29
      %p130 = scmp.eq.s32.totalorder %s129, 0
      %s132 = sadd.s32 %s131, 1
      %s133 = scalar_select %p130, %s131, %s132
      %p136 = pneg %p130
      %p137 = scmp.eq.s32.totalorder %s22, 1
      %p138 = por %p136, %p137
      %p139 = scmp.ne.s32.totalorder %s131, %s134
      %p140 = scmp.eq.s32.totalorder %s22, 0
      %p141 = por %p139, %p140
      %p142 = scmp.ne.s32.totalorder %s131, %s134
      %p143 = scmp.eq.s32.totalorder %s27, 1
      %p144 = por %p142, %p143
      %p145 = scmp.ne.s32.totalorder %s134, %s135
      %p146 = scmp.eq.s32.totalorder %s27, 0
      %p147 = por %p145, %p146
      %p148 = scmp.ne.s32.totalorder %s134, %s135
      %p149 = scmp.eq.s32.totalorder %s28, 1
      %p150 = por %p148, %p149
      %p152 = scmp.ne.s32.totalorder %s135, %s151
      %p153 = scmp.eq.s32.totalorder %s28, 0
      %p154 = por %p152, %p153
      %s155 = ssub.s32 %s22, %s29
      %p156 = scmp.eq.s32.totalorder %s155, 0
      %s158 = sadd.s32 %s157, 1
      %s159 = scalar_select %p156, %s157, %s158
      %p162 = pneg %p156
      %p163 = scmp.eq.s32.totalorder %s22, 1
      %p164 = por %p162, %p163
      %p165 = scmp.ne.s32.totalorder %s157, %s160
      %p166 = scmp.eq.s32.totalorder %s22, 0
      %p167 = por %p165, %p166
      %p168 = scmp.ne.s32.totalorder %s157, %s160
      %p169 = scmp.eq.s32.totalorder %s27, 1
      %p170 = por %p168, %p169
      %p171 = scmp.ne.s32.totalorder %s160, %s161
      %p172 = scmp.eq.s32.totalorder %s27, 0
      %p173 = por %p171, %p172
      %p174 = scmp.ne.s32.totalorder %s160, %s161
      %p175 = scmp.eq.s32.totalorder %s28, 1
      %p176 = por %p174, %p175
      %p178 = scmp.ne.s32.totalorder %s161, %s177
      %p179 = scmp.eq.s32.totalorder %s28, 0
      %p180 = por %p178, %p179
      %s181 = ssub.s32 %s22, %s29
      %p182 = scmp.eq.s32.totalorder %s181, 0
      %s184 = sadd.s32 %s183, 1
      %s185 = scalar_select %p182, %s183, %s184
      %p188 = pneg %p182
      %p189 = scmp.eq.s32.totalorder %s22, 1
      %p190 = por %p188, %p189
      %p191 = scmp.ne.s32.totalorder %s183, %s186
      %p192 = scmp.eq.s32.totalorder %s22, 0
      %p193 = por %p191, %p192
      %p194 = scmp.ne.s32.totalorder %s183, %s186
      %p195 = scmp.eq.s32.totalorder %s27, 1
      %p196 = por %p194, %p195
      %p197 = scmp.ne.s32.totalorder %s186, %s187
      %p198 = scmp.eq.s32.totalorder %s27, 0
      %p199 = por %p197, %p198
      %p200 = scmp.ne.s32.totalorder %s186, %s187
      %p201 = scmp.eq.s32.totalorder %s28, 1
      %p202 = por %p200, %p201
      %p204 = scmp.ne.s32.totalorder %s187, %s203
      %p205 = scmp.eq.s32.totalorder %s28, 0
      %p206 = por %p204, %p205
      %s207 = ssub.s32 %s22, %s29
      %p208 = scmp.eq.s32.totalorder %s207, 0
      %s210 = sadd.s32 %s209, 1
      %s211 = scalar_select %p208, %s209, %s210
      %p214 = pneg %p208
      %p215 = scmp.eq.s32.totalorder %s22, 1
      %p216 = por %p214, %p215
      %p217 = scmp.ne.s32.totalorder %s209, %s212
      %p218 = scmp.eq.s32.totalorder %s22, 0
      %p219 = por %p217, %p218
      %p220 = scmp.ne.s32.totalorder %s209, %s212
      %p221 = scmp.eq.s32.totalorder %s27, 1
      %p222 = por %p220, %p221
      %p223 = scmp.ne.s32.totalorder %s212, %s213
      %p224 = scmp.eq.s32.totalorder %s27, 0
      %p225 = por %p223, %p224
      %p226 = scmp.ne.s32.totalorder %s212, %s213
      %p227 = scmp.eq.s32.totalorder %s28, 1
      %p228 = por %p226, %p227
      %p230 = scmp.ne.s32.totalorder %s213, %s229
      %p231 = scmp.eq.s32.totalorder %s28, 0
      %p232 = por %p230, %p231
      %s234 = sadd.s32 %s233, 1
      %p237 = scmp.eq.s32.totalorder %s22, 1
      %p238 = scmp.ne.s32.totalorder %s233, %s235
      %p239 = scmp.eq.s32.totalorder %s22, 0
      %p240 = por %p238, %p239
      %p241 = scmp.ne.s32.totalorder %s233, %s235
      %p242 = scmp.eq.s32.totalorder %s27, 1
      %p243 = por %p241, %p242
      %p244 = scmp.ne.s32.totalorder %s235, %s236
      %p245 = scmp.eq.s32.totalorder %s27, 0
      %p246 = por %p244, %p245
      %p247 = scmp.ne.s32.totalorder %s235, %s236
      %p248 = scmp.eq.s32.totalorder %s28, 1
      %p249 = por %p247, %p248
      %p251 = scmp.ne.s32.totalorder %s236, %s250
      %p252 = scmp.eq.s32.totalorder %s28, 0
      %p253 = por %p251, %p252
      %p254 = scmp.le.s32.totalorder 1, %s22
      %p255 = scmp.lt.s32.totalorder %s22, 3
      %p256 = pnand %p254, %p255
      %p257 = pneg %p256
      // Predicated region
      $region9: #{tpu_custom_call.1} parent=5 // pred_check
        _
      $region10: #{tpu_custom_call.1} parent=5 // pred_check_branch
        %259 = sbr.rel (%p256) target = $region12
      $region11: #{tpu_custom_call.1} parent=5 // pred_region
        %s260 = ssub.s32 %s22, 1
        // Predicated region
        $region13: #{tpu_custom_call.1} parent=11 // pred_check
          %p261 = pneg %p43
        $region14: #{tpu_custom_call.1} parent=11 // pred_check_branch
          %263 = sbr.rel (%p261) target = $region16
        $region15: #{tpu_custom_call.1} parent=11 // pred_region
          %265 = vsyncadd [#allocation4], 0
          %s266 = sshll.u32 %s0, 4
          %s267 = int_to_ptr.hbm [resolvable:$true] %s266
          %s268 = sshll.u32 [#allocation3], 4
          %s269 = int_to_ptr.vmem [resolvable:$true] %s268
          %274 = dma.hbm_to_vmem [thread:$0]  %s267, 256, %s269, [#allocation4], 128, 128, 8
        $region16: #{tpu_custom_call.1} parent=11 // pred_fallthru
          _
      $region12: #{tpu_custom_call.1} parent=5 // pred_fallthru
        _
      %p275 = scmp.lt.s32.totalorder %s22, 2
      // Predicated region
      $region17: #{tpu_custom_call.1} parent=5 // pred_check
        %p276 = pneg %p275
      $region18: #{tpu_custom_call.1} parent=5 // pred_check_branch
        %278 = sbr.rel (%p276) target = $region20
      $region19: #{tpu_custom_call.1} parent=5 // pred_region
        // Predicated region
        $region21: #{tpu_custom_call.1} parent=19 // pred_check
          %p279 = pneg %p63
        $region22: #{tpu_custom_call.1} parent=19 // pred_check_branch
          %281 = sbr.rel (%p279) target = $region24
        $region23: #{tpu_custom_call.1} parent=19 // pred_region
          %s282 = sand.u32 %s22, 1
          %s283 = scalar_lea.sflag [#allocation7], %s282
          %s284 = sand.u32 %s53, 1
          %s285 = smul.addr %s284, 16
          %s286 = scalar_lea.vmem [#allocation6], %s285
          %288 = vsyncadd %s283, 0
          %s289 = smul.addr %s22, 4
          %s290 = smul.addr %s289, 4
          %s291 = scalar_lea.hbm %s1, %s290
          %s292 = sshll.u32 %s291, 4
          %s293 = int_to_ptr.hbm [resolvable:$true] %s292
          %s294 = sshll.u32 %s286, 4
          %s295 = int_to_ptr.vmem [resolvable:$true] %s294
          %300 = dma.hbm_to_vmem [thread:$0]  %s293, 256, %s295, %s283, 64, 64, 4
        $region24: #{tpu_custom_call.1} parent=19 // pred_fallthru
          _
        // Predicated region
        $region25: #{tpu_custom_call.1} parent=19 // pred_check
          %p301 = pneg %p89
        $region26: #{tpu_custom_call.1} parent=19 // pred_check_branch
          %303 = sbr.rel (%p301) target = $region28
        $region27: #{tpu_custom_call.1} parent=19 // pred_region
          %s304 = sand.u32 %s22, 1
          %s305 = scalar_lea.sflag [#allocation7], %s304
          %s306 = sand.u32 %s79, 1
          %s307 = scalar_lea.vmem [#allocation8], %s306
          %309 = vsyncadd %s305, 0
          %s310 = scalar_lea.hbm %s2, %s22
          %s312 = sshll.u32 %s310, 4
          %s313 = int_to_ptr.hbm [resolvable:$true] %s312
          %s314 = sshll.u32 %s307, 4
          %s315 = int_to_ptr.vmem [resolvable:$true] %s314
          %317 = dma.hbm_to_vmem [thread:$0]  %s313, 16, %s315, %s305
        $region28: #{tpu_custom_call.1} parent=19 // pred_fallthru
          _
        // Predicated region
        $region29: #{tpu_custom_call.1} parent=19 // pred_check
          %p318 = pneg %p115
        $region30: #{tpu_custom_call.1} parent=19 // pred_check_branch
          %320 = sbr.rel (%p318) target = $region32
        $region31: #{tpu_custom_call.1} parent=19 // pred_region
          %p321 = scmp.lt.s32.totalorder %s22, 1
          %s322 = scalar_select %p321, %s22, 1
          %s323 = scalar_lea.vmem %s3, %s322
        $region32: #{tpu_custom_call.1} parent=19 // pred_fallthru
          _
        // Predicated region
        $region33: #{tpu_custom_call.1} parent=19 // pred_check
          %p324 = pneg %p141
        $region34: #{tpu_custom_call.1} parent=19 // pred_check_branch
          %326 = sbr.rel (%p324) target = $region36
        $region35: #{tpu_custom_call.1} parent=19 // pred_region
          %s327 = sand.u32 %s22, 1
          %s328 = scalar_lea.sflag [#allocation10], %s327
          %s329 = sand.u32 %s131, 1
          %s330 = smul.addr %s329, 16
          %s331 = scalar_lea.vmem [#allocation9], %s330
          %333 = vsyncadd %s328, 0
          %s334 = smul.addr %s22, 4
          %s335 = smul.addr %s334, 4
          %s336 = scalar_lea.hbm %s4, %s335
          %s337 = sshll.u32 %s336, 4
          %s338 = int_to_ptr.hbm [resolvable:$true] %s337
          %s339 = sshll.u32 %s331, 4
          %s340 = int_to_ptr.vmem [resolvable:$true] %s339
          %345 = dma.hbm_to_vmem [thread:$0]  %s338, 256, %s340, %s328, 64, 64, 4
        $region36: #{tpu_custom_call.1} parent=19 // pred_fallthru
          _
        // Predicated region
        $region37: #{tpu_custom_call.1} parent=19 // pred_check
          %p346 = pneg %p167
        $region38: #{tpu_custom_call.1} parent=19 // pred_check_branch
          %348 = sbr.rel (%p346) target = $region40
        $region39: #{tpu_custom_call.1} parent=19 // pred_region
          %p349 = scmp.lt.s32.totalorder %s22, 1
          %s350 = scalar_select %p349, %s22, 1
          %s351 = scalar_lea.vmem %s5, %s350
        $region40: #{tpu_custom_call.1} parent=19 // pred_fallthru
          _
        // Predicated region
        $region41: #{tpu_custom_call.1} parent=19 // pred_check
          %p352 = pneg %p193
        $region42: #{tpu_custom_call.1} parent=19 // pred_check_branch
          %354 = sbr.rel (%p352) target = $region44
        $region43: #{tpu_custom_call.1} parent=19 // pred_region
          %s355 = sand.u32 %s22, 1
          %s356 = scalar_lea.sflag [#allocation10], %s355
          %s357 = sand.u32 %s183, 1
          %s358 = scalar_lea.vmem [#allocation11], %s357
          %360 = vsyncadd %s356, 0
          %s361 = scalar_lea.hbm %s6, %s22
          %s363 = sshll.u32 %s361, 4
          %s364 = int_to_ptr.hbm [resolvable:$true] %s363
          %s365 = sshll.u32 %s358, 4
          %s366 = int_to_ptr.vmem [resolvable:$true] %s365
          %368 = dma.hbm_to_vmem [thread:$0]  %s364, 16, %s366, %s356
        $region44: #{tpu_custom_call.1} parent=19 // pred_fallthru
          _
        // Predicated region
        $region45: #{tpu_custom_call.1} parent=19 // pred_check
          %p369 = pneg %p219
        $region46: #{tpu_custom_call.1} parent=19 // pred_check_branch
          %371 = sbr.rel (%p369) target = $region48
        $region47: #{tpu_custom_call.1} parent=19 // pred_region
          %p372 = scmp.lt.s32.totalorder %s22, 1
          %s373 = scalar_select %p372, %s22, 1
          %s374 = scalar_lea.vmem %s7, %s373
        $region48: #{tpu_custom_call.1} parent=19 // pred_fallthru
          _
      $region20: #{tpu_custom_call.1} parent=5 // pred_fallthru
        _
      %p375 = scmp.le.s32.totalorder 1, %s22
      %p376 = scmp.lt.s32.totalorder %s22, 3
      %p377 = pnand %p375, %p376
      %p378 = pneg %p377
      // Predicated region
      $region49: #{tpu_custom_call.1} parent=5 // pred_check
        _
      $region50: #{tpu_custom_call.1} parent=5 // pred_check_branch
        %380 = sbr.rel (%p377) target = $region52
      $region51: #{tpu_custom_call.1} parent=5 // pred_region
        %s381 = ssub.s32 %s22, 1
        // Predicated region
        $region53: #{tpu_custom_call.1} parent=51 // pred_check
          %p382 = pneg %p43
        $region54: #{tpu_custom_call.1} parent=51 // pred_check_branch
          %384 = sbr.rel (%p382) target = $region56
        $region55: #{tpu_custom_call.1} parent=51 // pred_region
          %386 = dma.done [#allocation4], 256
        $region56: #{tpu_custom_call.1} parent=51 // pred_fallthru
          _
        %s387 = sand.u32 %s27, 1
        %s388 = scalar_lea.sflag [#allocation7], %s387
        %s389 = sand.u32 %s56, 1
        %s390 = smul.addr %s389, 16
        %s391 = scalar_lea.vmem [#allocation6], %s390
        // Predicated region
        $region57: #{tpu_custom_call.1} parent=51 // pred_check
          %p392 = pneg %p69
        $region58: #{tpu_custom_call.1} parent=51 // pred_check_branch
          %394 = sbr.rel (%p392) target = $region60
        $region59: #{tpu_custom_call.1} parent=51 // pred_region
          %396 = dma.done %s388, 256
        $region60: #{tpu_custom_call.1} parent=51 // pred_fallthru
          _
        %s397 = sand.u32 %s27, 1
        %s398 = scalar_lea.sflag [#allocation7], %s397
        %s399 = sand.u32 %s82, 1
        %s400 = scalar_lea.vmem [#allocation8], %s399
        // Predicated region
        $region61: #{tpu_custom_call.1} parent=51 // pred_check
          %p401 = pneg %p95
        $region62: #{tpu_custom_call.1} parent=51 // pred_check_branch
          %403 = sbr.rel (%p401) target = $region64
        $region63: #{tpu_custom_call.1} parent=51 // pred_region
          %405 = dma.done %s398, 16
        $region64: #{tpu_custom_call.1} parent=51 // pred_fallthru
          _
        %s406 = sand.u32 %s27, 1
        %s407 = scalar_lea.sflag [#allocation10], %s406
        %s408 = sand.u32 %s134, 1
        %s409 = smul.addr %s408, 16
        %s410 = scalar_lea.vmem [#allocation9], %s409
        // Predicated region
        $region65: #{tpu_custom_call.1} parent=51 // pred_check
          %p411 = pneg %p147
        $region66: #{tpu_custom_call.1} parent=51 // pred_check_branch
          %413 = sbr.rel (%p411) target = $region68
        $region67: #{tpu_custom_call.1} parent=51 // pred_region
          %415 = dma.done %s407, 256
        $region68: #{tpu_custom_call.1} parent=51 // pred_fallthru
          _
        %s416 = sand.u32 %s27, 1
        %s417 = scalar_lea.sflag [#allocation10], %s416
        %s418 = sand.u32 %s186, 1
        %s419 = scalar_lea.vmem [#allocation11], %s418
        // Predicated region
        $region69: #{tpu_custom_call.1} parent=51 // pred_check
          %p420 = pneg %p199
        $region70: #{tpu_custom_call.1} parent=51 // pred_check_branch
          %422 = sbr.rel (%p420) target = $region72
        $region71: #{tpu_custom_call.1} parent=51 // pred_region
          %424 = dma.done %s417, 16
        $region72: #{tpu_custom_call.1} parent=51 // pred_fallthru
          _
        %p425 = pneg %p43
        %p426 = pneg %p40
        %s427 = sand.u32 %s27, 1
        %s428 = scalar_lea.sflag [#allocation7], %s427
        %s429 = sand.u32 %s56, 1
        %s430 = smul.addr %s429, 16
        %s431 = scalar_lea.vmem [#allocation6], %s430
        %p432 = pneg %p69
        %p433 = pneg %p66
        %s434 = sand.u32 %s27, 1
        %s435 = scalar_lea.sflag [#allocation7], %s434
        %s436 = sand.u32 %s82, 1
        %s437 = scalar_lea.vmem [#allocation8], %s436
        %p438 = pneg %p95
        %p439 = pneg %p92
        %p440 = scmp.lt.s32.totalorder %s27, 1
        %s441 = scalar_select %p440, %s27, 1
        %s442 = scalar_lea.vmem %s3, %s441
        %p443 = pneg %p121
        %p444 = pneg %p118
        %s445 = sand.u32 %s27, 1
        %s446 = scalar_lea.sflag [#allocation10], %s445
        %s447 = sand.u32 %s134, 1
        %s448 = smul.addr %s447, 16
        %s449 = scalar_lea.vmem [#allocation9], %s448
        %p450 = pneg %p147
        %p451 = pneg %p144
        %p452 = scmp.lt.s32.totalorder %s27, 1
        %s453 = scalar_select %p452, %s27, 1
        %s454 = scalar_lea.vmem %s5, %s453
        %p455 = pneg %p173
        %p456 = pneg %p170
        %s457 = sand.u32 %s27, 1
        %s458 = scalar_lea.sflag [#allocation10], %s457
        %s459 = sand.u32 %s186, 1
        %s460 = scalar_lea.vmem [#allocation11], %s459
        %p461 = pneg %p199
        %p462 = pneg %p196
        %p463 = scmp.lt.s32.totalorder %s27, 1
        %s464 = scalar_select %p463, %s27, 1
        %s465 = scalar_lea.vmem %s7, %s464
        %p466 = pneg %p225
        %p467 = pneg %p222
        %p468 = pneg %p246
        %p469 = pneg %p243
        %p470 = scmp.lt.s32.totalorder %s27, 1
        %s471 = scalar_select %p470, %s27, 1
        %s472 = scalar_lea.vmem %s3, %s471
        %p473 = scmp.lt.s32.totalorder %s27, 1
        %s474 = scalar_select %p473, %s27, 1
        %s475 = scalar_lea.vmem %s5, %s474
        %p476 = scmp.lt.s32.totalorder %s27, 1
        %s477 = scalar_select %p476, %s27, 1
        %s478 = scalar_lea.vmem %s7, %s477
        %p480 = scmp.eq.s32.totalorder %s27, 0
        // Predicated region
        $region73: #{tpu_custom_call.1} parent=51 // pred_check
          %p481 = pneg %p480
        $region74: #{tpu_custom_call.1} parent=51 // pred_check_branch
          %483 = sbr.rel (%p481) target = $region76
        $region75: #{tpu_custom_call.1} parent=51 // pred_region
          %v484 = vld [vmem:[#allocation3] sm:$0xff]
          %v485 = vld [vmem:[#allocation3 + $0x8] sm:$0xff]
          %vm486 = vcmask 261120
          %487 = vst.msk [vmem:[#allocation2] sm:$0xff] %vm486, %v484
          %488 = vst.msk [vmem:[#allocation2 + $0x8] sm:$0xff] %vm486, %v485
        $region76: #{tpu_custom_call.1} parent=51 // pred_fallthru
          _
        %v489 = vld [vmem:[#allocation2] sm:$0xff]
        %v490 = vld [vmem:[#allocation2 + $0x8] sm:$0xff]
        %v491 = vpack.c.bf16 %v490, %v489
        %v492 = vld [vmem:[%s391] sm:$0xf]
        %v493 = vld [vmem:[%s391 + $0x4] sm:$0xf]
        %v494 = vld [vmem:[%s391 + $0x8] sm:$0xf]
        %v495 = vld [vmem:[%s391 + $0xc] sm:$0xf]
        %v500 = vunpack.c.l.b16 %v492
        %v501 = vunpack.c.l.b16 %v493
        %v502 = vunpack.c.l.b16 %v494
        %v503 = vunpack.c.l.b16 %v495
        %v504 = vpack.c.b16 %v501, %v500
        %v505 = vpack.c.b16 %v503, %v502
        %vm508 = vcmask 261120
        %v510 = vsel %vm508, %v491, 0
        %512 = vmatpush.bf16.msra.mxu0 0
        %513 = vmatpush.bf16.msra.mxu0 0
        %514 = vmatpush.bf16.msra.mxu0 0
        %515 = vmatpush.bf16.msra.mxu0 0
        %516 = vmatpush.bf16.msra.mxu0 0
        %517 = vmatpush.bf16.msra.mxu0 0
        %518 = vmatpush.bf16.msra.mxu0 %v505
        %519 = vmatpush.bf16.msra.mxu0 %v504
        %520 = vmatmul.bf16.gmra.mxu0 %v510
        %v521 = vpop.f32.mrf.mxu0
        %v522 = vadd.f32 0.0, %v521
        %v523 = vpop.f32.mrf.mxu0
        %v524 = vadd.f32 0.0, %v523
        %525 = vdwg.mxu0
        %v526 = vpack.c.bf16 %v522, %v522
        %v527 = vpack.c.bf16 %v524, %v524
        %v529 = vunpack.c.l.b16 %v526
        %v530 = vpack.c.b16 %v529, %v529
        %531 = vrot.lane.b32.xlu0 %v530, 96
        %v532 = vpop.permute.xlu0 %531
        %v534 = vsel %vm508, %v526, 0
        %v537 = vsel %vm508, %v532, 0
        %539 = vmatpush.bf16.xpose.msra.mxu0 0
        %540 = vmatpush.bf16.xpose.msra.mxu0 0
        %541 = vmatpush.bf16.xpose.msra.mxu0 0
        %542 = vmatpush.bf16.xpose.msra.mxu0 0
        %543 = vmatpush.bf16.xpose.msra.mxu0 0
        %544 = vmatpush.bf16.xpose.msra.mxu0 0
        %545 = vmatpush.bf16.xpose.msra.mxu0 0
        %546 = vmatpush.bf16.xpose.msra.mxu0 %v537
        %547 = vmatmul.bf16.gmra.mxu0 %v534
        %v548 = vpop.f32.mrf.mxu0
        %v549 = vadd.f32 0.0, %v548
        %v550 = vpop.f32.mrf.mxu0
        %551 = vdwg.mxu0
        %v553 = vunpack.c.l.b16 %v527
        %v554 = vpack.c.b16 %v553, %v553
        %555 = vrot.lane.b32.xlu0 %v554, 96
        %v556 = vpop.permute.xlu0 %555
        %v558 = vsel %vm508, %v527, 0
        %v561 = vsel %vm508, %v556, 0
        %563 = vmatpush.bf16.xpose.msra.mxu0 0
        %564 = vmatpush.bf16.xpose.msra.mxu0 0
        %565 = vmatpush.bf16.xpose.msra.mxu0 0
        %566 = vmatpush.bf16.xpose.msra.mxu0 0
        %567 = vmatpush.bf16.xpose.msra.mxu0 0
        %568 = vmatpush.bf16.xpose.msra.mxu0 0
        %569 = vmatpush.bf16.xpose.msra.mxu0 0
        %570 = vmatpush.bf16.xpose.msra.mxu0 %v561
        %571 = vmatmul.bf16.gmra.mxu0 %v558
        %v572 = vpop.f32.mrf.mxu0
        %v573 = vadd.f32 0.0, %v572
        %v574 = vpop.f32.mrf.mxu0
        %575 = vdwg.mxu0
        %v576 = vmul.f32 %v549, 0.17677669
        %v577 = vmul.f32 %v573, 0.17677669
        %vm578 = vcmask 64512
        %v579 = vsel %vm578, %v576, -inf
        %v580 = vsel %vm578, %v577, -inf
        %v581 = vmax.f32 %v579, %v580
        %v582 = vsub.f32 %v576, %v581
        %v583 = vsub.f32 %v577, %v581
        %v584 = vmul.f32 %v582, 1.442695
        %v585 = vpow.pop %v584
        %v586 = vmul.f32 %v583, 1.442695
        %v587 = vpow.pop %v586
        %v588 = vsel %vm578, %v585, 0.0
        %v589 = vsel %vm578, %v587, 0.0
        %v590 = vadd.f32 %v588, %v589
        %v591 = vrcp.pop %v590
        %v592 = vmul.f32 %v585, %v591
        %v593 = vmul.f32 %v587, %v591
        %v594 = vpack.c.bf16 %v592, %v592
        %v595 = vpack.c.bf16 %v593, %v593
        %596 = vrot.lane.b32.xlu0 %v530, 64
        %v597 = vpop.permute.xlu0 %596
        %v599 = vsel %vm578, %v594, 0
        %vm601 = vcmask 1043456
        %v603 = vsel %vm601, %v597, 0
        %605 = vmatpush.bf16.msra.mxu0 0
        %606 = vmatpush.bf16.msra.mxu0 0
        %607 = vmatpush.bf16.msra.mxu0 0
        %608 = vmatpush.bf16.msra.mxu0 0
        %609 = vmatpush.bf16.msra.mxu0 0
        %610 = vmatpush.bf16.msra.mxu0 0
        %611 = vmatpush.bf16.msra.mxu0 0
        %612 = vmatpush.bf16.msra.mxu0 %v603
        %613 = vmatmul.bf16.gmra.mxu0 %v599
        %v614 = vpop.f32.mrf.mxu0
        %v615 = vadd.f32 %v489, %v614
        %v616 = vpop.f32.mrf.mxu0
        %617 = vdwg.mxu0
        %618 = vrot.lane.b32.xlu0 %v554, 64
        %v619 = vpop.permute.xlu0 %618
        %v621 = vsel %vm578, %v595, 0
        %v624 = vsel %vm601, %v619, 0
        %626 = vmatpush.bf16.msra.mxu0 0
        %627 = vmatpush.bf16.msra.mxu0 0
        %628 = vmatpush.bf16.msra.mxu0 0
        %629 = vmatpush.bf16.msra.mxu0 0
        %630 = vmatpush.bf16.msra.mxu0 0
        %631 = vmatpush.bf16.msra.mxu0 0
        %632 = vmatpush.bf16.msra.mxu0 0
        %633 = vmatpush.bf16.msra.mxu0 %v624
        %634 = vmatmul.bf16.gmra.mxu0 %v621
        %v635 = vpop.f32.mrf.mxu0
        %v636 = vadd.f32 %v490, %v635
        %v637 = vpop.f32.mrf.mxu0
        %638 = vdwg.mxu0
        %v639 = vld [vmem:[%s400] sm:$0x1]
        %v640 = vld [vmem:[%s472] sm:$0x1]
        %v641 = vsel %vm508, %v615, 0.0
        %642 = vadd.xlane.f32.xlu0 %v641
        %v643 = vpop.xlane.xlu0 %642
        %v644 = vsel %vm508, %v636, 0.0
        %645 = vadd.xlane.f32.xlu0 %v644
        %v646 = vpop.xlane.xlu0 %645
        %v647 = vrcp.pop 32.0
        %v648 = vmul.f32 32.0, %v647
        %v649 = vsub.f32 1.0, %v648
        %v650 = vmul.f32 %v647, %v649
        %v651 = vadd.f32 %v647, %v650
        %vm652 = vweird.f32 %v647
        %v653 = vsel %vm652, %v647, %v651
        %v654 = vmul.f32 %v643, %v653
        %v655 = vmul.f32 %v646, %v653
        %v656 = vsub.f32 %v615, %v654
        %v657 = vsub.f32 %v636, %v655
        %v658 = vmul.f32 %v656, %v656
        %v659 = vmul.f32 %v657, %v657
        %v660 = vsel %vm508, %v658, 0.0
        %661 = vadd.xlane.f32.xlu0 %v660
        %v662 = vpop.xlane.xlu0 %661
        %v663 = vsel %vm508, %v659, 0.0
        %664 = vadd.xlane.f32.xlu0 %v663
        %v665 = vpop.xlane.xlu0 %664
        %v666 = vmul.f32 %v662, %v653
        %v667 = vmul.f32 %v665, %v653
        %v668 = vadd.f32 %v666, 1e-05
        %v669 = vadd.f32 %v667, 1e-05
        %v670 = vrsqrt.pop %v668
        %v671 = vmul.f32 %v670, %v668
        %v672 = vmul.f32 %v671, %v670
        %v673 = vmul.f32 0.5, %v672
        %v674 = vsub.f32 1.5, %v673
        %v675 = vmul.f32 %v670, %v674
        %vm676 = vweird.f32 %v668
        %vm677 = vweird.f32 %v670
        %vm678 = vmor %vm676, %vm677
        %v679 = vsel %vm678, %v670, %v675
        %v680 = vrsqrt.pop %v669
        %v681 = vmul.f32 %v680, %v669
        %v682 = vmul.f32 %v681, %v680
        %v683 = vmul.f32 0.5, %v682
        %v684 = vsub.f32 1.5, %v683
        %v685 = vmul.f32 %v680, %v684
        %vm686 = vweird.f32 %v669
        %vm687 = vweird.f32 %v680
        %vm688 = vmor %vm686, %vm687
        %v689 = vsel %vm688, %v680, %v685
        %v690 = vmul.f32 %v656, %v679
        %v691 = vmul.f32 %v657, %v689
        %v693 = vperm.slane %v639, 0
        %v695 = vmul.f32 %v690, %v693
        %v696 = vmul.f32 %v691, %v693
        %v698 = vperm.slane %v640, 0
        %v700 = vadd.f32 %v695, %v698
        %v701 = vadd.f32 %v696, %v698
        %v702 = vpack.c.bf16 %v701, %v700
        %v703 = vld [vmem:[%s410] sm:$0xf]
        %v704 = vld [vmem:[%s410 + $0x4] sm:$0xf]
        %v705 = vld [vmem:[%s410 + $0x8] sm:$0xf]
        %v706 = vld [vmem:[%s410 + $0xc] sm:$0xf]
        %v707 = vld [vmem:[%s475] sm:$0x1]
        %v709 = vperm.slane %v707, 0
        %v715 = vunpack.c.l.b16 %v703
        %v716 = vunpack.c.l.b16 %v704
        %v717 = vunpack.c.l.b16 %v705
        %v718 = vunpack.c.l.b16 %v706
        %v719 = vpack.c.b16 %v716, %v715
        %v720 = vpack.c.b16 %v718, %v717
        %v724 = vsel %vm508, %v702, 0
        %726 = vmatpush.bf16.msra.mxu0 0
        %727 = vmatpush.bf16.msra.mxu0 0
        %728 = vmatpush.bf16.msra.mxu0 0
        %729 = vmatpush.bf16.msra.mxu0 0
        %730 = vmatpush.bf16.msra.mxu0 0
        %731 = vmatpush.bf16.msra.mxu0 0
        %732 = vmatpush.bf16.msra.mxu0 %v720
        %733 = vmatpush.bf16.msra.mxu0 %v719
        %734 = vmatmul.bf16.gmra.mxu0 %v724
        %v735 = vpop.f32.mrf.mxu0
        %v736 = vadd.f32 %v709, %v735
        %v737 = vpop.f32.mrf.mxu0
        %v738 = vadd.f32 %v709, %v737
        %739 = vdwg.mxu0
        %v740 = vmax.f32 %v736, 0.0
        %v741 = vmax.f32 %v738, 0.0
        %v742 = vadd.f32 %v740, %v700
        %v743 = vadd.f32 %v741, %v701
        %v744 = vld [vmem:[%s419] sm:$0x1]
        %v745 = vld [vmem:[%s478] sm:$0x1]
        %v746 = vsel %vm508, %v742, 0.0
        %747 = vadd.xlane.f32.xlu0 %v746
        %v748 = vpop.xlane.xlu0 %747
        %v749 = vsel %vm508, %v743, 0.0
        %750 = vadd.xlane.f32.xlu0 %v749
        %v751 = vpop.xlane.xlu0 %750
        %v752 = vmul.f32 %v748, %v653
        %v753 = vmul.f32 %v751, %v653
        %v754 = vsub.f32 %v742, %v752
        %v755 = vsub.f32 %v743, %v753
        %v756 = vmul.f32 %v754, %v754
        %v757 = vmul.f32 %v755, %v755
        %v758 = vsel %vm508, %v756, 0.0
        %759 = vadd.xlane.f32.xlu0 %v758
        %v760 = vpop.xlane.xlu0 %759
        %v761 = vsel %vm508, %v757, 0.0
        %762 = vadd.xlane.f32.xlu0 %v761
        %v763 = vpop.xlane.xlu0 %762
        %v764 = vmul.f32 %v760, %v653
        %v765 = vmul.f32 %v763, %v653
        %v766 = vadd.f32 %v764, 1e-05
        %v767 = vadd.f32 %v765, 1e-05
        %v768 = vrsqrt.pop %v766
        %v769 = vmul.f32 %v768, %v766
        %v770 = vmul.f32 %v769, %v768
        %v771 = vmul.f32 0.5, %v770
        %v772 = vsub.f32 1.5, %v771
        %v773 = vmul.f32 %v768, %v772
        %vm774 = vweird.f32 %v766
        %vm775 = vweird.f32 %v768
        %vm776 = vmor %vm774, %vm775
        %v777 = vsel %vm776, %v768, %v773
        %v778 = vrsqrt.pop %v767
        %v779 = vmul.f32 %v778, %v767
        %v780 = vmul.f32 %v779, %v778
        %v781 = vmul.f32 0.5, %v780
        %v782 = vsub.f32 1.5, %v781
        %v783 = vmul.f32 %v778, %v782
        %vm784 = vweird.f32 %v767
        %vm785 = vweird.f32 %v778
        %vm786 = vmor %vm784, %vm785
        %v787 = vsel %vm786, %v778, %v783
        %v788 = vmul.f32 %v754, %v777
        %v789 = vmul.f32 %v755, %v787
        %v791 = vperm.slane %v744, 0
        %v793 = vmul.f32 %v788, %v791
        %v794 = vmul.f32 %v789, %v791
        %v796 = vperm.slane %v745, 0
        %v798 = vadd.f32 %v793, %v796
        %v799 = vadd.f32 %v794, %v796
        %800 = vst.msk [vmem:[#allocation2] sm:$0xff] %vm508, %v798
        %801 = vst.msk [vmem:[#allocation2 + $0x8] sm:$0xff] %vm508, %v799
        %p802 = scmp.eq.s32.totalorder %s27, 1
        // Predicated region
        $region77: #{tpu_custom_call.1} parent=51 // pred_check
          %p803 = pneg %p802
        $region78: #{tpu_custom_call.1} parent=51 // pred_check_branch
          %805 = sbr.rel (%p803) target = $region80
        $region79: #{tpu_custom_call.1} parent=51 // pred_region
          %806 = vst.msk [vmem:[#allocation12] sm:$0xff] %vm508, %v798
          %807 = vst.msk [vmem:[#allocation12 + $0x8] sm:$0xff] %vm508, %v799
        $region80: #{tpu_custom_call.1} parent=51 // pred_fallthru
          _
        // Predicated region
        $region81: #{tpu_custom_call.1} parent=51 // pred_check
          %p808 = pneg %p243
        $region82: #{tpu_custom_call.1} parent=51 // pred_check_branch
          %810 = sbr.rel (%p808) target = $region84
        $region83: #{tpu_custom_call.1} parent=51 // pred_region
          %812 = vsyncadd [#allocation5], 0
          %s813 = sshll.u32 [#allocation12], 4
          %s814 = int_to_ptr.vmem [resolvable:$true] %s813
          %s815 = sshll.u32 %s8, 4
          %s816 = int_to_ptr.hbm [resolvable:$true] %s815
          %821 = dma.vmem_to_hbm [thread:$0]  %s814, 256, %s816, [#allocation5], 128, 128, 8
        $region84: #{tpu_custom_call.1} parent=51 // pred_fallthru
          _
        // Predicated region
        $region85: #{tpu_custom_call.1} parent=51 // pred_check
          %p822 = pneg %p243
        $region86: #{tpu_custom_call.1} parent=51 // pred_check_branch
          %824 = sbr.rel (%p822) target = $region88
        $region87: #{tpu_custom_call.1} parent=51 // pred_region
          %826 = dma.done [#allocation5], 256
        $region88: #{tpu_custom_call.1} parent=51 // pred_fallthru
          _
      $region52: #{tpu_custom_call.1} parent=5 // pred_fallthru
        _
      %p827 = scmp.le.s32.totalorder 2, %s22
      // Predicated region
      $region89: #{tpu_custom_call.1} parent=5 // pred_check
        %p828 = pneg %p827
      $region90: #{tpu_custom_call.1} parent=5 // pred_check_branch
        %830 = sbr.rel (%p828) target = $region92
      $region91: #{tpu_custom_call.1} parent=5 // pred_region
        %s831 = ssub.s32 %s22, 2
      $region92: #{tpu_custom_call.1} parent=5 // pred_fallthru
        _
    $region6: #{tpu_custom_call.1} parent=1 // loop_footer
      %s26 = sadd.s32 1, %s22
    $region7: #{tpu_custom_call.1} parent=1 // loop_footer_branch
      %21 = sbr.rel target = $region3
    $region8: #{tpu_custom_call.1} parent=1 // loop_exit
      _
    %832 = vsyncpa [#allocation4], 1
    %s833 = scalar_lea.sflag [#allocation4], 1
    %834 = vsyncpa %s833, 1
    %835 = vsyncpa [#allocation7], 1
    %s836 = scalar_lea.sflag [#allocation7], 1
    %837 = vsyncpa %s836, 1
    %838 = vsyncpa [#allocation10], 1
    %s839 = scalar_lea.sflag [#allocation10], 1
    %840 = vsyncpa %s839, 1
    %841 = vsyncpa [#allocation5], 1
    %s842 = scalar_lea.sflag [#allocation5], 1
    %843 = vsyncpa %s842, 1

</llo_original>
